<compile_context>
chip_gen: v6e
topology: v6e:2x2x1
jax: 0.10.0
libtpu: 0.0.40
codegen_flags: <defaults>
</compile_context>

<pallas_src>
import jax
import jax.numpy as jnp
from jax.experimental import pallas as pl
from jax.experimental.pallas import tpu as pltpu


def _round_up(x, m):
    return ((x + m - 1) // m) * m


def _pad_to(x, target_shape):
    pads = [(0, t - s) for s, t in zip(x.shape, target_shape)]
    return jnp.pad(x, pads)


def _fpn_kernel(fps_ref, w1_ref, b1_ref, w2_ref, b2_ref, out_ref):
    # fps_ref: (TB, Kp) bf16, w1_ref: (Kp, Hp) bf16  -> MXU, f32 accumulation.
    h = jnp.dot(fps_ref[...], w1_ref[...], preferred_element_type=jnp.float32)
    # bias + ReLU fused into one VPU expression (lane-dense Hp=128).
    h = jnp.maximum(h + b1_ref[...], 0.0)
    # Second (tiny) matmul kept in f32: w2 is only Hp*Op*4 bytes.
    o = jnp.dot(h, w2_ref[...], preferred_element_type=jnp.float32) + b2_ref[...]
    out_ref[...] = o.astype(out_ref.dtype)


def fpn_forward(fps, w1, b1, w2, b2, *, tile_b=128):
    """fps: (B, Cin) f32; w1: (Cin, H); b1: (1, H); w2: (H, O); b2: (1, O).

    Returns (B, O) f32 = relu(fps @ w1 + b1) @ w2 + b2, computed with fps/w1
    in bf16 (f32 accumulation). Padding to lane/sublane multiples is internal.
    """
    B, K = fps.shape
    H = w1.shape[1]
    O = w2.shape[1]

    Kp = _round_up(K, 128)          # 1363 -> 1408
    Hp = _round_up(H, 128)          # 32   -> 128
    Op = _round_up(O, 128)          # 8    -> 128
    TB = min(tile_b, _round_up(B, 8))
    Bp = _round_up(B, TB)

    # Zero-padding is exact for the affine layers; padded hidden units are
    # relu(0 + 0) = 0 and feed zero rows of w2; padded output cols are sliced.
    fps_p = _pad_to(fps, (Bp, Kp)).astype(jnp.bfloat16)
    w1_p = _pad_to(w1, (Kp, Hp)).astype(jnp.bfloat16)
    b1_p = _pad_to(b1, (1, Hp)).astype(jnp.float32)
    w2_p = _pad_to(w2, (Hp, Op)).astype(jnp.float32)
    b2_p = _pad_to(b2, (1, Op)).astype(jnp.float32)

    grid = (Bp // TB,)
    flops = 2 * Bp * Kp * Hp + 2 * Bp * Hp * Op
    bytes_accessed = (fps_p.size * 2 + w1_p.size * 2 + b1_p.size * 4
                      + w2_p.size * 4 + b2_p.size * 4 + Bp * Op * 4)

    out_p = pl.pallas_call(
        _fpn_kernel,
        out_shape=jax.ShapeDtypeStruct((Bp, Op), jnp.float32),
        grid_spec=pltpu.PrefetchScalarGridSpec(
            num_scalar_prefetch=0,
            grid=grid,
            in_specs=[
                # Activations: tiled over batch.
                pl.BlockSpec((TB, Kp), lambda i: (i, 0)),
                # Weights / biases: constant block index -> VMEM-resident
                # across batch tiles (DMA'd once).
                pl.BlockSpec((Kp, Hp), lambda i: (0, 0)),
                pl.BlockSpec((1, Hp), lambda i: (0, 0)),
                pl.BlockSpec((Hp, Op), lambda i: (0, 0)),
                pl.BlockSpec((1, Op), lambda i: (0, 0)),
            ],
            out_specs=pl.BlockSpec((TB, Op), lambda i: (i, 0)),
        ),
        compiler_params=pltpu.CompilerParams(
            dimension_semantics=("parallel",),   # shards batch tiles on v7x
            vmem_limit_bytes=4 << 20,            # working set << 4 MiB
        ),
        cost_estimate=pl.CostEstimate(
            flops=flops, transcendentals=0, bytes_accessed=bytes_accessed),
    )(fps_p, w1_p, b1_p, w2_p, b2_p)

    return out_p[:B, :O]


if __name__ == "__main__":
    # Module config (small): fp_type='mixed' -> in_channels=1363,
    # hidden_channels=32, out_channels=8, batch of 8 "molecules".
    batch = 8
    in_channels = 1363
    hidden_channels = 32
    out_channels = 8

    key = jax.random.PRNGKey(0)
    k_fp, k_w1, k_b1, k_w2, k_b2 = jax.random.split(key, 5)

    # Synthetic binary fingerprint tensor (stands in for the RDKit features).
    fps = (jax.random.uniform(k_fp, (batch, in_channels)) > 0.5).astype(jnp.float32)

    # Deterministic parameter init (nn.Linear-style uniform bounds).
    bound1 = 1.0 / (in_channels ** 0.5)
    w1 = jax.random.uniform(k_w1, (in_channels, hidden_channels),
                            minval=-bound1, maxval=bound1).astype(jnp.float32)
    b1 = jax.random.uniform(k_b1, (1, hidden_channels),
                            minval=-bound1, maxval=bound1).astype(jnp.float32)
    bound2 = 1.0 / (hidden_channels ** 0.5)
    w2 = jax.random.uniform(k_w2, (hidden_channels, out_channels),
                            minval=-bound2, maxval=bound2).astype(jnp.float32)
    b2 = jax.random.uniform(k_b2, (1, out_channels),
                            minval=-bound2, maxval=bound2).astype(jnp.float32)

    out = fpn_forward(fps, w1, b1, w2, b2)
    out = jax.block_until_ready(out)
    assert out.shape == (batch, out_channels)

    # Exact-path check: reference computed with the same bf16-quantized
    # fps/w1 the kernel consumes (fps is 0/1 so bf16 is exact; products of
    # bf16 values are exact in f32, so only summation order differs).
    fps_q = fps.astype(jnp.bfloat16).astype(jnp.float32)
    w1_q = w1.astype(jnp.bfloat16).astype(jnp.float32)
    ref_q = jnp.maximum(fps_q @ w1_q + b1, 0.0) @ w2 + b2
    assert jnp.allclose(out, ref_q, atol=1e-4, rtol=1e-4)

    # Semantics check vs. the full-f32 module math (tolerance accounts for
    # bf16 storage of w1, the only quantized quantity).
    ref_f32 = jnp.maximum(fps @ w1 + b1, 0.0) @ w2 + b2
    assert jnp.allclose(out, ref_f32, atol=1e-2, rtol=1e-2)

    print("KERNEL_OK")
</pallas_src>

<mosaic_0001>
module attributes {stable_mosaic.version = 11 : i64} {
  func.func @_fpn_kernel(%arg0: i32, %arg1: memref<8x1408xbf16, #tpu.memory_space<vmem>>, %arg2: memref<1408x128xbf16, #tpu.memory_space<vmem>>, %arg3: memref<1x128xf32, #tpu.memory_space<vmem>>, %arg4: memref<128x128xf32, #tpu.memory_space<vmem>>, %arg5: memref<1x128xf32, #tpu.memory_space<vmem>>, %arg6: memref<8x128xf32, #tpu.memory_space<vmem>>) attributes {dimension_semantics = [#tpu.dimension_semantics<parallel>], iteration_bounds = array<i64: 1>, scalar_prefetch = 0 : i64, scratch_operands = 0 : i64, tpu.core_type = #tpu.core_type<tc>, window_params = [{transform_indices = @transform_0, window_bounds = array<i64: 8, 1408>}, {pipeline_mode = #tpu.pipeline_mode<synchronous>, transform_indices = @transform_1, window_bounds = array<i64: 1408, 128>}, {pipeline_mode = #tpu.pipeline_mode<synchronous>, transform_indices = @transform_2, window_bounds = array<i64: 1, 128>}, {pipeline_mode = #tpu.pipeline_mode<synchronous>, transform_indices = @transform_3, window_bounds = array<i64: 128, 128>}, {pipeline_mode = #tpu.pipeline_mode<synchronous>, transform_indices = @transform_4, window_bounds = array<i64: 1, 128>}, {transform_indices = @transform_5, window_bounds = array<i64: 8, 128>}]} {
    %c0 = arith.constant 0 : index
    %c0_0 = arith.constant 0 : index
    %0 = vector.load %arg1[%c0, %c0_0] : memref<8x1408xbf16, #tpu.memory_space<vmem>>, vector<8x1408xbf16>
    %c0_1 = arith.constant 0 : index
    %c0_2 = arith.constant 0 : index
    %1 = vector.load %arg2[%c0_1, %c0_2] : memref<1408x128xbf16, #tpu.memory_space<vmem>>, vector<1408x128xbf16>
    %cst = arith.constant dense<0.000000e+00> : vector<8x128xf32>
    %2 = tpu.matmul %0, %1, %cst {dimension_numbers = #tpu.dot_dimension_numbers<[1], [0], [0], [1], [0, 0, 1, 1], [], []>} : vector<8x1408xbf16>, vector<1408x128xbf16>, vector<8x128xf32> -> vector<8x128xf32>
    %c0_3 = arith.constant 0 : index
    %c0_4 = arith.constant 0 : index
    %3 = vector.load %arg3[%c0_3, %c0_4] : memref<1x128xf32, #tpu.memory_space<vmem>>, vector<1x128xf32>
    %4 = vector.broadcast %3 : vector<1x128xf32> to vector<8x128xf32>
    %5 = arith.addf %2, %4 : vector<8x128xf32>
    %cst_5 = arith.constant 0.000000e+00 : f32
    %6 = vector.broadcast %cst_5 : f32 to vector<8x128xf32>
    %7 = arith.maximumf %5, %6 : vector<8x128xf32>
    %c0_6 = arith.constant 0 : index
    %c0_7 = arith.constant 0 : index
    %8 = vector.load %arg4[%c0_6, %c0_7] : memref<128x128xf32, #tpu.memory_space<vmem>>, vector<128x128xf32>
    %cst_8 = arith.constant dense<0.000000e+00> : vector<8x128xf32>
    %9 = tpu.matmul %7, %8, %cst_8 {dimension_numbers = #tpu.dot_dimension_numbers<[1], [0], [0], [1], [0, 0, 1, 1], [], []>} : vector<8x128xf32>, vector<128x128xf32>, vector<8x128xf32> -> vector<8x128xf32>
    %c0_9 = arith.constant 0 : index
    %c0_10 = arith.constant 0 : index
    %10 = vector.load %arg5[%c0_9, %c0_10] : memref<1x128xf32, #tpu.memory_space<vmem>>, vector<1x128xf32>
    %11 = vector.broadcast %10 : vector<1x128xf32> to vector<8x128xf32>
    %12 = arith.addf %9, %11 : vector<8x128xf32>
    %c0_11 = arith.constant 0 : index
    %c0_12 = arith.constant 0 : index
    %13 = vector.load %arg6[%c0_11, %c0_12] : memref<8x128xf32, #tpu.memory_space<vmem>>, vector<8x128xf32>
    tpu.vector_store %arg6[%c0_11, %c0_12], %12 {strides = array<i32>} : memref<8x128xf32, #tpu.memory_space<vmem>>, vector<8x128xf32>,
    return
  }
  func.func @transform_0(%arg0: i32) -> (i32, i32) {
    %c0_i32 = arith.constant 0 : i32
    %c0_i32_0 = arith.constant 0 : i32
    return %arg0, %c0_i32 : i32, i32
  }
  func.func @transform_1(%arg0: i32) -> (i32, i32) {
    %c0_i32 = arith.constant 0 : i32
    %c0_i32_0 = arith.constant 0 : i32
    %c0_i32_1 = arith.constant 0 : i32
    return %c0_i32, %c0_i32_0 : i32, i32
  }
  func.func @transform_2(%arg0: i32) -> (i32, i32) {
    %c0_i32 = arith.constant 0 : i32
    %c0_i32_0 = arith.constant 0 : i32
    %c0_i32_1 = arith.constant 0 : i32
    return %c0_i32, %c0_i32_0 : i32, i32
  }
  func.func @transform_3(%arg0: i32) -> (i32, i32) {
    %c0_i32 = arith.constant 0 : i32
    %c0_i32_0 = arith.constant 0 : i32
    %c0_i32_1 = arith.constant 0 : i32
    return %c0_i32, %c0_i32_0 : i32, i32
  }
  func.func @transform_4(%arg0: i32) -> (i32, i32) {
    %c0_i32 = arith.constant 0 : i32
    %c0_i32_0 = arith.constant 0 : i32
    %c0_i32_1 = arith.constant 0 : i32
    return %c0_i32, %c0_i32_0 : i32, i32
  }
  func.func @transform_5(%arg0: i32) -> (i32, i32) {
    %c0_i32 = arith.constant 0 : i32
    %c0_i32_0 = arith.constant 0 : i32
    return %arg0, %c0_i32 : i32, i32
  }
}

</mosaic_0001>

<llo_original>
// kernel: tpu_custom_call.1
$region0: #{tpu_custom_call.1}
  #allocation0 [shape = 'u32[]', space=smem, size = 0x4, offset = 0x4, fixed_abs, tag = 'smem constant byte address 0x4 - core index']
  #allocation1 [shape = 'u32[144,128]{1,0:T(1,128)}', space=vmem, size = 0x12000, scoped, tag = 'internal scratch']
  %s0 = inlined_call_operand.hbm [shape: bf16[8,1408], index: 0, kind: input, shape index: {}]
  %s1 = inlined_call_operand.hbm [shape: bf16[1408,128], index: 1, kind: input, shape index: {}]
  %s2 = inlined_call_operand.vmem [shape: f32[1,128], index: 2, kind: input, shape index: {}]
  %s3 = inlined_call_operand.hbm [shape: f32[128,128], index: 3, kind: input, shape index: {}]
  %s4 = inlined_call_operand.vmem [shape: f32[1,128], index: 4, kind: input, shape index: {}]
  %s5 = inlined_call_operand.hbm [shape: f32[8,128], index: 5, kind: output, shape index: {}]
  %s6 = sld [smem:[#allocation0]]
  $region42: #{tpu_custom_call.1} parent=0
    _
  %s8 = ssub.s32 1, %s6
  %s9 = scalar_select 0, %s8, %s6
  $region1: #{tpu_custom_call.1} parent=0
    #allocation2 [shape = 'u8[22528]{0}', space=vmem, size = 0x5800, scoped, tag = 'input window, operand 0, single buffered']
    #allocation3 [shape = 's32[1]{0}', space=sflag, size = 0x4, scoped, tag = 'scoped memory for tpu_custom_call.1']
    #allocation4 [shape = 's32[1]{0}', space=sflag, size = 0x4, scoped, tag = 'scoped memory for tpu_custom_call.1']
    #allocation5 [shape = 'u8[360448]{0}', space=vmem, size = 0x58000, scoped, tag = 'input window, operand 1, single buffered']
    #allocation6 [shape = 's32[1]{0}', space=sflag, size = 0x4, scoped, tag = 'scoped memory for tpu_custom_call.1']
    #allocation7 [shape = 'u8[65536]{0}', space=vmem, size = 0x10000, scoped, tag = 'input window, operand 3, single buffered']
    #allocation8 [shape = 'u8[4096]{0}', space=vmem, size = 0x1000, scoped, tag = 'output window, operand 0, single buffered']
    %10 = vsyncpa [#allocation3], 0
    %11 = vsyncpa [#allocation6], 0
    %12 = vsyncpa [#allocation4], 0
    // Predicated region
    $region2: #{tpu_custom_call.1} parent=1 // pred_check
      _
    $region3: #{tpu_custom_call.1} parent=1 // pred_check_branch
      %14 = sbr.rel (0) target = $region5
    $region4: #{tpu_custom_call.1} parent=1 // pred_region
      %s16 = ssub.s32 704, 704
      %17 = vsyncadd [#allocation3], %s16
      %s19 = sshll.u32 [#allocation2], 4
      %s20 = int_to_ptr.vmem [resolvable:$true] %s19
      %22 = dma.hbm_to_vmem [thread:$0]  %s0, 704, %s20, [#allocation3]
    $region5: #{tpu_custom_call.1} parent=1 // pred_fallthru
      _
    // Predicated region
    $region6: #{tpu_custom_call.1} parent=1 // pred_check
      _
    $region7: #{tpu_custom_call.1} parent=1 // pred_check_branch
      %24 = sbr.rel (0) target = $region9
    $region8: #{tpu_custom_call.1} parent=1 // pred_region
      %s26 = ssub.s32 11264, 11264
      %27 = vsyncadd [#allocation6], %s26
      %s28 = sshll.u32 [#allocation5], 4
      %s29 = int_to_ptr.vmem [resolvable:$true] %s28
      %34 = dma.hbm_to_vmem [thread:$0]  %s1, 11264, %s29, [#allocation6], 64, 64, 4
    $region9: #{tpu_custom_call.1} parent=1 // pred_fallthru
      _
    // Predicated region
    $region10: #{tpu_custom_call.1} parent=1 // pred_check
      _
    $region11: #{tpu_custom_call.1} parent=1 // pred_check_branch
      %36 = sbr.rel (0) target = $region13
    $region12: #{tpu_custom_call.1} parent=1 // pred_region
      _
    $region13: #{tpu_custom_call.1} parent=1 // pred_fallthru
      _
    // Predicated region
    $region14: #{tpu_custom_call.1} parent=1 // pred_check
      _
    $region15: #{tpu_custom_call.1} parent=1 // pred_check_branch
      %38 = sbr.rel (0) target = $region17
    $region16: #{tpu_custom_call.1} parent=1 // pred_region
      %s40 = ssub.s32 2048, 2048
      %41 = vsyncadd [#allocation6], %s40
      %s42 = sshll.u32 [#allocation7], 4
      %s43 = int_to_ptr.vmem [resolvable:$true] %s42
      %48 = dma.hbm_to_vmem [thread:$0]  %s3, 2048, %s43, [#allocation6], 128, 128, 8
    $region17: #{tpu_custom_call.1} parent=1 // pred_fallthru
      _
    // Predicated region
    $region18: #{tpu_custom_call.1} parent=1 // pred_check
      _
    $region19: #{tpu_custom_call.1} parent=1 // pred_check_branch
      %50 = sbr.rel (0) target = $region21
    $region20: #{tpu_custom_call.1} parent=1 // pred_region
      _
    $region21: #{tpu_custom_call.1} parent=1 // pred_fallthru
      _
    // Predicated region
    $region22: #{tpu_custom_call.1} parent=1 // pred_check
      _
    $region23: #{tpu_custom_call.1} parent=1 // pred_check_branch
      %52 = sbr.rel (0) target = $region25
    $region24: #{tpu_custom_call.1} parent=1 // pred_region
      %53 = dma.done [#allocation3], 704
    $region25: #{tpu_custom_call.1} parent=1 // pred_fallthru
      _
    // Predicated region
    $region26: #{tpu_custom_call.1} parent=1 // pred_check
      _
    $region27: #{tpu_custom_call.1} parent=1 // pred_check_branch
      %55 = sbr.rel (0) target = $region29
    $region28: #{tpu_custom_call.1} parent=1 // pred_region
      %56 = dma.done [#allocation6], 11264
    $region29: #{tpu_custom_call.1} parent=1 // pred_fallthru
      _
    // Predicated region
    $region30: #{tpu_custom_call.1} parent=1 // pred_check
      _
    $region31: #{tpu_custom_call.1} parent=1 // pred_check_branch
      %58 = sbr.rel (0) target = $region33
    $region32: #{tpu_custom_call.1} parent=1 // pred_region
      %59 = dma.done [#allocation6], 2048
    $region33: #{tpu_custom_call.1} parent=1 // pred_fallthru
      _
    %v61 = vld [vmem:[#allocation2] sm:$0xff]
    %v62 = vld [vmem:[#allocation2 + $0x8] sm:$0xff]
    %v63 = vld [vmem:[#allocation2 + $0x10] sm:$0xff]
    %v64 = vld [vmem:[#allocation2 + $0x18] sm:$0xff]
    %v65 = vld [vmem:[#allocation2 + $0x20] sm:$0xff]
    %v66 = vld [vmem:[#allocation2 + $0x28] sm:$0xf]
    %v67 = vld [vmem:[#allocation5] sm:$0xf]
    %v68 = vld [vmem:[#allocation5 + $0x4] sm:$0xf]
    %v69 = vld [vmem:[#allocation5 + $0x8] sm:$0xf]
    %v70 = vld [vmem:[#allocation5 + $0xc] sm:$0xf]
    %v71 = vld [vmem:[#allocation5 + $0x10] sm:$0xf]
    %v72 = vld [vmem:[#allocation5 + $0x14] sm:$0xf]
    %v73 = vld [vmem:[#allocation5 + $0x18] sm:$0xf]
    %v74 = vld [vmem:[#allocation5 + $0x1c] sm:$0xf]
    %v75 = vld [vmem:[#allocation5 + $0x20] sm:$0xf]
    %v76 = vld [vmem:[#allocation5 + $0x24] sm:$0xf]
    %v77 = vld [vmem:[#allocation5 + $0x28] sm:$0xf]
    %v78 = vld [vmem:[#allocation5 + $0x2c] sm:$0xf]
    %v79 = vld [vmem:[#allocation5 + $0x30] sm:$0xf]
    %v80 = vld [vmem:[#allocation5 + $0x34] sm:$0xf]
    %v81 = vld [vmem:[#allocation5 + $0x38] sm:$0xf]
    %v82 = vld [vmem:[#allocation5 + $0x3c] sm:$0xf]
    %v83 = vld [vmem:[#allocation5 + $0x40] sm:$0xf]
    %v84 = vld [vmem:[#allocation5 + $0x44] sm:$0xf]
    %v85 = vld [vmem:[#allocation5 + $0x48] sm:$0xf]
    %v86 = vld [vmem:[#allocation5 + $0x4c] sm:$0xf]
    %v87 = vld [vmem:[#allocation5 + $0x50] sm:$0xf]
    %v88 = vld [vmem:[#allocation5 + $0x54] sm:$0xf]
    %v89 = vld [vmem:[#allocation5 + $0x58] sm:$0xf]
    %v90 = vld [vmem:[#allocation5 + $0x5c] sm:$0xf]
    %v91 = vld [vmem:[#allocation5 + $0x60] sm:$0xf]
    %v92 = vld [vmem:[#allocation5 + $0x64] sm:$0xf]
    %v93 = vld [vmem:[#allocation5 + $0x68] sm:$0xf]
    %v94 = vld [vmem:[#allocation5 + $0x6c] sm:$0xf]
    %v95 = vld [vmem:[#allocation5 + $0x70] sm:$0xf]
    %v96 = vld [vmem:[#allocation5 + $0x74] sm:$0xf]
    %v97 = vld [vmem:[#allocation5 + $0x78] sm:$0xf]
    %v98 = vld [vmem:[#allocation5 + $0x7c] sm:$0xf]
    %v99 = vld [vmem:[#allocation5 + $0x80] sm:$0xf]
    %v100 = vld [vmem:[#allocation5 + $0x84] sm:$0xf]
    %v101 = vld [vmem:[#allocation5 + $0x88] sm:$0xf]
    %v102 = vld [vmem:[#allocation5 + $0x8c] sm:$0xf]
    %v103 = vld [vmem:[#allocation5 + $0x90] sm:$0xf]
    %v104 = vld [vmem:[#allocation5 + $0x94] sm:$0xf]
    %v105 = vld [vmem:[#allocation5 + $0x98] sm:$0xf]
    %v106 = vld [vmem:[#allocation5 + $0x9c] sm:$0xf]
    %v107 = vld [vmem:[#allocation5 + $0xa0] sm:$0xf]
    %v108 = vld [vmem:[#allocation5 + $0xa4] sm:$0xf]
    %v109 = vld [vmem:[#allocation5 + $0xa8] sm:$0xf]
    %v110 = vld [vmem:[#allocation5 + $0xac] sm:$0xf]
    %v111 = vld [vmem:[#allocation5 + $0xb0] sm:$0xf]
    %v112 = vld [vmem:[#allocation5 + $0xb4] sm:$0xf]
    %v113 = vld [vmem:[#allocation5 + $0xb8] sm:$0xf]
    %v114 = vld [vmem:[#allocation5 + $0xbc] sm:$0xf]
    %v115 = vld [vmem:[#allocation5 + $0xc0] sm:$0xf]
    %v116 = vld [vmem:[#allocation5 + $0xc4] sm:$0xf]
    %v117 = vld [vmem:[#allocation5 + $0xc8] sm:$0xf]
    %v118 = vld [vmem:[#allocation5 + $0xcc] sm:$0xf]
    %v119 = vld [vmem:[#allocation5 + $0xd0] sm:$0xf]
    %v120 = vld [vmem:[#allocation5 + $0xd4] sm:$0xf]
    %v121 = vld [vmem:[#allocation5 + $0xd8] sm:$0xf]
    %v122 = vld [vmem:[#allocation5 + $0xdc] sm:$0xf]
    %v123 = vld [vmem:[#allocation5 + $0xe0] sm:$0xf]
    %v124 = vld [vmem:[#allocation5 + $0xe4] sm:$0xf]
    %v125 = vld [vmem:[#allocation5 + $0xe8] sm:$0xf]
    %v126 = vld [vmem:[#allocation5 + $0xec] sm:$0xf]
    %v127 = vld [vmem:[#allocation5 + $0xf0] sm:$0xf]
    %v128 = vld [vmem:[#allocation5 + $0xf4] sm:$0xf]
    %v129 = vld [vmem:[#allocation5 + $0xf8] sm:$0xf]
    %v130 = vld [vmem:[#allocation5 + $0xfc] sm:$0xf]
    %v131 = vld [vmem:[#allocation5 + $0x100] sm:$0xf]
    %v132 = vld [vmem:[#allocation5 + $0x104] sm:$0xf]
    %v133 = vld [vmem:[#allocation5 + $0x108] sm:$0xf]
    %v134 = vld [vmem:[#allocation5 + $0x10c] sm:$0xf]
    %v135 = vld [vmem:[#allocation5 + $0x110] sm:$0xf]
    %v136 = vld [vmem:[#allocation5 + $0x114] sm:$0xf]
    %v137 = vld [vmem:[#allocation5 + $0x118] sm:$0xf]
    %v138 = vld [vmem:[#allocation5 + $0x11c] sm:$0xf]
    %v139 = vld [vmem:[#allocation5 + $0x120] sm:$0xf]
    %v140 = vld [vmem:[#allocation5 + $0x124] sm:$0xf]
    %v141 = vld [vmem:[#allocation5 + $0x128] sm:$0xf]
    %v142 = vld [vmem:[#allocation5 + $0x12c] sm:$0xf]
    %v143 = vld [vmem:[#allocation5 + $0x130] sm:$0xf]
    %v144 = vld [vmem:[#allocation5 + $0x134] sm:$0xf]
    %v145 = vld [vmem:[#allocation5 + $0x138] sm:$0xf]
    %v146 = vld [vmem:[#allocation5 + $0x13c] sm:$0xf]
    %v147 = vld [vmem:[#allocation5 + $0x140] sm:$0xf]
    %v148 = vld [vmem:[#allocation5 + $0x144] sm:$0xf]
    %v149 = vld [vmem:[#allocation5 + $0x148] sm:$0xf]
    %v150 = vld [vmem:[#allocation5 + $0x14c] sm:$0xf]
    %v151 = vld [vmem:[#allocation5 + $0x150] sm:$0xf]
    %v152 = vld [vmem:[#allocation5 + $0x154] sm:$0xf]
    %v153 = vld [vmem:[#allocation5 + $0x158] sm:$0xf]
    %v154 = vld [vmem:[#allocation5 + $0x15c] sm:$0xf]
    %v155 = vld [vmem:[#allocation5 + $0x160] sm:$0xf]
    %v156 = vld [vmem:[#allocation5 + $0x164] sm:$0xf]
    %v157 = vld [vmem:[#allocation5 + $0x168] sm:$0xf]
    %v158 = vld [vmem:[#allocation5 + $0x16c] sm:$0xf]
    %v159 = vld [vmem:[#allocation5 + $0x170] sm:$0xf]
    %v160 = vld [vmem:[#allocation5 + $0x174] sm:$0xf]
    %v161 = vld [vmem:[#allocation5 + $0x178] sm:$0xf]
    %v162 = vld [vmem:[#allocation5 + $0x17c] sm:$0xf]
    %v163 = vld [vmem:[#allocation5 + $0x180] sm:$0xf]
    %v164 = vld [vmem:[#allocation5 + $0x184] sm:$0xf]
    %v165 = vld [vmem:[#allocation5 + $0x188] sm:$0xf]
    %v166 = vld [vmem:[#allocation5 + $0x18c] sm:$0xf]
    %v167 = vld [vmem:[#allocation5 + $0x190] sm:$0xf]
    %v168 = vld [vmem:[#allocation5 + $0x194] sm:$0xf]
    %v169 = vld [vmem:[#allocation5 + $0x198] sm:$0xf]
    %v170 = vld [vmem:[#allocation5 + $0x19c] sm:$0xf]
    %v171 = vld [vmem:[#allocation5 + $0x1a0] sm:$0xf]
    %v172 = vld [vmem:[#allocation5 + $0x1a4] sm:$0xf]
    %v173 = vld [vmem:[#allocation5 + $0x1a8] sm:$0xf]
    %v174 = vld [vmem:[#allocation5 + $0x1ac] sm:$0xf]
    %v175 = vld [vmem:[#allocation5 + $0x1b0] sm:$0xf]
    %v176 = vld [vmem:[#allocation5 + $0x1b4] sm:$0xf]
    %v177 = vld [vmem:[#allocation5 + $0x1b8] sm:$0xf]
    %v178 = vld [vmem:[#allocation5 + $0x1bc] sm:$0xf]
    %v179 = vld [vmem:[#allocation5 + $0x1c0] sm:$0xf]
    %v180 = vld [vmem:[#allocation5 + $0x1c4] sm:$0xf]
    %v181 = vld [vmem:[#allocation5 + $0x1c8] sm:$0xf]
    %v182 = vld [vmem:[#allocation5 + $0x1cc] sm:$0xf]
    %v183 = vld [vmem:[#allocation5 + $0x1d0] sm:$0xf]
    %v184 = vld [vmem:[#allocation5 + $0x1d4] sm:$0xf]
    %v185 = vld [vmem:[#allocation5 + $0x1d8] sm:$0xf]
    %v186 = vld [vmem:[#allocation5 + $0x1dc] sm:$0xf]
    %v187 = vld [vmem:[#allocation5 + $0x1e0] sm:$0xf]
    %v188 = vld [vmem:[#allocation5 + $0x1e4] sm:$0xf]
    %v189 = vld [vmem:[#allocation5 + $0x1e8] sm:$0xf]
    %v190 = vld [vmem:[#allocation5 + $0x1ec] sm:$0xf]
    %v191 = vld [vmem:[#allocation5 + $0x1f0] sm:$0xf]
    %v192 = vld [vmem:[#allocation5 + $0x1f4] sm:$0xf]
    %v193 = vld [vmem:[#allocation5 + $0x1f8] sm:$0xf]
    %v194 = vld [vmem:[#allocation5 + $0x1fc] sm:$0xf]
    %v195 = vld [vmem:[#allocation5 + $0x200] sm:$0xf]
    %v196 = vld [vmem:[#allocation5 + $0x204] sm:$0xf]
    %v197 = vld [vmem:[#allocation5 + $0x208] sm:$0xf]
    %v198 = vld [vmem:[#allocation5 + $0x20c] sm:$0xf]
    %v199 = vld [vmem:[#allocation5 + $0x210] sm:$0xf]
    %v200 = vld [vmem:[#allocation5 + $0x214] sm:$0xf]
    %v201 = vld [vmem:[#allocation5 + $0x218] sm:$0xf]
    %v202 = vld [vmem:[#allocation5 + $0x21c] sm:$0xf]
    %v203 = vld [vmem:[#allocation5 + $0x220] sm:$0xf]
    %v204 = vld [vmem:[#allocation5 + $0x224] sm:$0xf]
    %v205 = vld [vmem:[#allocation5 + $0x228] sm:$0xf]
    %v206 = vld [vmem:[#allocation5 + $0x22c] sm:$0xf]
    %v207 = vld [vmem:[#allocation5 + $0x230] sm:$0xf]
    %v208 = vld [vmem:[#allocation5 + $0x234] sm:$0xf]
    %v209 = vld [vmem:[#allocation5 + $0x238] sm:$0xf]
    %v210 = vld [vmem:[#allocation5 + $0x23c] sm:$0xf]
    %v211 = vld [vmem:[#allocation5 + $0x240] sm:$0xf]
    %v212 = vld [vmem:[#allocation5 + $0x244] sm:$0xf]
    %v213 = vld [vmem:[#allocation5 + $0x248] sm:$0xf]
    %v214 = vld [vmem:[#allocation5 + $0x24c] sm:$0xf]
    %v215 = vld [vmem:[#allocation5 + $0x250] sm:$0xf]
    %v216 = vld [vmem:[#allocation5 + $0x254] sm:$0xf]
    %v217 = vld [vmem:[#allocation5 + $0x258] sm:$0xf]
    %v218 = vld [vmem:[#allocation5 + $0x25c] sm:$0xf]
    %v219 = vld [vmem:[#allocation5 + $0x260] sm:$0xf]
    %v220 = vld [vmem:[#allocation5 + $0x264] sm:$0xf]
    %v221 = vld [vmem:[#allocation5 + $0x268] sm:$0xf]
    %v222 = vld [vmem:[#allocation5 + $0x26c] sm:$0xf]
    %v223 = vld [vmem:[#allocation5 + $0x270] sm:$0xf]
    %v224 = vld [vmem:[#allocation5 + $0x274] sm:$0xf]
    %v225 = vld [vmem:[#allocation5 + $0x278] sm:$0xf]
    %v226 = vld [vmem:[#allocation5 + $0x27c] sm:$0xf]
    %v227 = vld [vmem:[#allocation5 + $0x280] sm:$0xf]
    %v228 = vld [vmem:[#allocation5 + $0x284] sm:$0xf]
    %v229 = vld [vmem:[#allocation5 + $0x288] sm:$0xf]
    %v230 = vld [vmem:[#allocation5 + $0x28c] sm:$0xf]
    %v231 = vld [vmem:[#allocation5 + $0x290] sm:$0xf]
    %v232 = vld [vmem:[#allocation5 + $0x294] sm:$0xf]
    %v233 = vld [vmem:[#allocation5 + $0x298] sm:$0xf]
    %v234 = vld [vmem:[#allocation5 + $0x29c] sm:$0xf]
    %v235 = vld [vmem:[#allocation5 + $0x2a0] sm:$0xf]
    %v236 = vld [vmem:[#allocation5 + $0x2a4] sm:$0xf]
    %v237 = vld [vmem:[#allocation5 + $0x2a8] sm:$0xf]
    %v238 = vld [vmem:[#allocation5 + $0x2ac] sm:$0xf]
    %v239 = vld [vmem:[#allocation5 + $0x2b0] sm:$0xf]
    %v240 = vld [vmem:[#allocation5 + $0x2b4] sm:$0xf]
    %v241 = vld [vmem:[#allocation5 + $0x2b8] sm:$0xf]
    %v242 = vld [vmem:[#allocation5 + $0x2bc] sm:$0xf]
    %v243 = vld [vmem:[%s2] sm:$0x1]
    %v245 = vlaneseq
    %v246 = vshrl.u32 %v245, 7
    %v247 = vsub.s32 0, %v246
    %v248 = vrot.slane %v243, %v247
    %v256 = vunpack.c.l.b16 %v61
    %v257 = vunpack.c.h.b16 %v61
    %v258 = vunpack.c.l.b16 %v62
    %v259 = vunpack.c.h.b16 %v62
    %v260 = vunpack.c.l.b16 %v63
    %v261 = vunpack.c.h.b16 %v63
    %v262 = vunpack.c.l.b16 %v64
    %v263 = vunpack.c.h.b16 %v64
    %v264 = vunpack.c.l.b16 %v65
    %v265 = vunpack.c.h.b16 %v65
    %v266 = vunpack.c.l.b16 %v66
    %v267 = vpack.c.b16 %v256, %v256
    %v268 = vpack.c.b16 %v257, %v257
    %v269 = vpack.c.b16 %v258, %v258
    %v270 = vpack.c.b16 %v259, %v259
    %v271 = vpack.c.b16 %v260, %v260
    %v272 = vpack.c.b16 %v261, %v261
    %v273 = vpack.c.b16 %v262, %v262
    %v274 = vpack.c.b16 %v263, %v263
    %v275 = vpack.c.b16 %v264, %v264
    %v276 = vpack.c.b16 %v265, %v265
    %v277 = vpack.c.b16 %v266, %v266
    %v465 = vunpack.c.l.b16 %v67
    %v466 = vunpack.c.l.b16 %v68
    %v467 = vunpack.c.l.b16 %v69
    %v468 = vunpack.c.l.b16 %v70
    %v469 = vunpack.c.l.b16 %v71
    %v470 = vunpack.c.l.b16 %v72
    %v471 = vunpack.c.l.b16 %v73
    %v472 = vunpack.c.l.b16 %v74
    %v473 = vunpack.c.l.b16 %v75
    %v474 = vunpack.c.l.b16 %v76
    %v475 = vunpack.c.l.b16 %v77
    %v476 = vunpack.c.l.b16 %v78
    %v477 = vunpack.c.l.b16 %v79
    %v478 = vunpack.c.l.b16 %v80
    %v479 = vunpack.c.l.b16 %v81
    %v480 = vunpack.c.l.b16 %v82
    %v481 = vunpack.c.l.b16 %v83
    %v482 = vunpack.c.l.b16 %v84
    %v483 = vunpack.c.l.b16 %v85
    %v484 = vunpack.c.l.b16 %v86
    %v485 = vunpack.c.l.b16 %v87
    %v486 = vunpack.c.l.b16 %v88
    %v487 = vunpack.c.l.b16 %v89
    %v488 = vunpack.c.l.b16 %v90
    %v489 = vunpack.c.l.b16 %v91
    %v490 = vunpack.c.l.b16 %v92
    %v491 = vunpack.c.l.b16 %v93
    %v492 = vunpack.c.l.b16 %v94
    %v493 = vunpack.c.l.b16 %v95
    %v494 = vunpack.c.l.b16 %v96
    %v495 = vunpack.c.l.b16 %v97
    %v496 = vunpack.c.l.b16 %v98
    %v497 = vunpack.c.l.b16 %v99
    %v498 = vunpack.c.l.b16 %v100
    %v499 = vunpack.c.l.b16 %v101
    %v500 = vunpack.c.l.b16 %v102
    %v501 = vunpack.c.l.b16 %v103
    %v502 = vunpack.c.l.b16 %v104
    %v503 = vunpack.c.l.b16 %v105
    %v504 = vunpack.c.l.b16 %v106
    %v505 = vunpack.c.l.b16 %v107
    %v506 = vunpack.c.l.b16 %v108
    %v507 = vunpack.c.l.b16 %v109
    %v508 = vunpack.c.l.b16 %v110
    %v509 = vunpack.c.l.b16 %v111
    %v510 = vunpack.c.l.b16 %v112
    %v511 = vunpack.c.l.b16 %v113
    %v512 = vunpack.c.l.b16 %v114
    %v513 = vunpack.c.l.b16 %v115
    %v514 = vunpack.c.l.b16 %v116
    %v515 = vunpack.c.l.b16 %v117
    %v516 = vunpack.c.l.b16 %v118
    %v517 = vunpack.c.l.b16 %v119
    %v518 = vunpack.c.l.b16 %v120
    %v519 = vunpack.c.l.b16 %v121
    %v520 = vunpack.c.l.b16 %v122
    %v521 = vunpack.c.l.b16 %v123
    %v522 = vunpack.c.l.b16 %v124
    %v523 = vunpack.c.l.b16 %v125
    %v524 = vunpack.c.l.b16 %v126
    %v525 = vunpack.c.l.b16 %v127
    %v526 = vunpack.c.l.b16 %v128
    %v527 = vunpack.c.l.b16 %v129
    %v528 = vunpack.c.l.b16 %v130
    %v529 = vunpack.c.l.b16 %v131
    %v530 = vunpack.c.l.b16 %v132
    %v531 = vunpack.c.l.b16 %v133
    %v532 = vunpack.c.l.b16 %v134
    %v533 = vunpack.c.l.b16 %v135
    %v534 = vunpack.c.l.b16 %v136
    %v535 = vunpack.c.l.b16 %v137
    %v536 = vunpack.c.l.b16 %v138
    %v537 = vunpack.c.l.b16 %v139
    %v538 = vunpack.c.l.b16 %v140
    %v539 = vunpack.c.l.b16 %v141
    %v540 = vunpack.c.l.b16 %v142
    %v541 = vunpack.c.l.b16 %v143
    %v542 = vunpack.c.l.b16 %v144
    %v543 = vunpack.c.l.b16 %v145
    %v544 = vunpack.c.l.b16 %v146
    %v545 = vunpack.c.l.b16 %v147
    %v546 = vunpack.c.l.b16 %v148
    %v547 = vunpack.c.l.b16 %v149
    %v548 = vunpack.c.l.b16 %v150
    %v549 = vunpack.c.l.b16 %v151
    %v550 = vunpack.c.l.b16 %v152
    %v551 = vunpack.c.l.b16 %v153
    %v552 = vunpack.c.l.b16 %v154
    %v553 = vunpack.c.l.b16 %v155
    %v554 = vunpack.c.l.b16 %v156
    %v555 = vunpack.c.l.b16 %v157
    %v556 = vunpack.c.l.b16 %v158
    %v557 = vunpack.c.l.b16 %v159
    %v558 = vunpack.c.l.b16 %v160
    %v559 = vunpack.c.l.b16 %v161
    %v560 = vunpack.c.l.b16 %v162
    %v561 = vunpack.c.l.b16 %v163
    %v562 = vunpack.c.l.b16 %v164
    %v563 = vunpack.c.l.b16 %v165
    %v564 = vunpack.c.l.b16 %v166
    %v565 = vunpack.c.l.b16 %v167
    %v566 = vunpack.c.l.b16 %v168
    %v567 = vunpack.c.l.b16 %v169
    %v568 = vunpack.c.l.b16 %v170
    %v569 = vunpack.c.l.b16 %v171
    %v570 = vunpack.c.l.b16 %v172
    %v571 = vunpack.c.l.b16 %v173
    %v572 = vunpack.c.l.b16 %v174
    %v573 = vunpack.c.l.b16 %v175
    %v574 = vunpack.c.l.b16 %v176
    %v575 = vunpack.c.l.b16 %v177
    %v576 = vunpack.c.l.b16 %v178
    %v577 = vunpack.c.l.b16 %v179
    %v578 = vunpack.c.l.b16 %v180
    %v579 = vunpack.c.l.b16 %v181
    %v580 = vunpack.c.l.b16 %v182
    %v581 = vunpack.c.l.b16 %v183
    %v582 = vunpack.c.l.b16 %v184
    %v583 = vunpack.c.l.b16 %v185
    %v584 = vunpack.c.l.b16 %v186
    %v585 = vunpack.c.l.b16 %v187
    %v586 = vunpack.c.l.b16 %v188
    %v587 = vunpack.c.l.b16 %v189
    %v588 = vunpack.c.l.b16 %v190
    %v589 = vunpack.c.l.b16 %v191
    %v590 = vunpack.c.l.b16 %v192
    %v591 = vunpack.c.l.b16 %v193
    %v592 = vunpack.c.l.b16 %v194
    %v593 = vunpack.c.l.b16 %v195
    %v594 = vunpack.c.l.b16 %v196
    %v595 = vunpack.c.l.b16 %v197
    %v596 = vunpack.c.l.b16 %v198
    %v597 = vunpack.c.l.b16 %v199
    %v598 = vunpack.c.l.b16 %v200
    %v599 = vunpack.c.l.b16 %v201
    %v600 = vunpack.c.l.b16 %v202
    %v601 = vunpack.c.l.b16 %v203
    %v602 = vunpack.c.l.b16 %v204
    %v603 = vunpack.c.l.b16 %v205
    %v604 = vunpack.c.l.b16 %v206
    %v605 = vunpack.c.l.b16 %v207
    %v606 = vunpack.c.l.b16 %v208
    %v607 = vunpack.c.l.b16 %v209
    %v608 = vunpack.c.l.b16 %v210
    %v609 = vunpack.c.l.b16 %v211
    %v610 = vunpack.c.l.b16 %v212
    %v611 = vunpack.c.l.b16 %v213
    %v612 = vunpack.c.l.b16 %v214
    %v613 = vunpack.c.l.b16 %v215
    %v614 = vunpack.c.l.b16 %v216
    %v615 = vunpack.c.l.b16 %v217
    %v616 = vunpack.c.l.b16 %v218
    %v617 = vunpack.c.l.b16 %v219
    %v618 = vunpack.c.l.b16 %v220
    %v619 = vunpack.c.l.b16 %v221
    %v620 = vunpack.c.l.b16 %v222
    %v621 = vunpack.c.l.b16 %v223
    %v622 = vunpack.c.l.b16 %v224
    %v623 = vunpack.c.l.b16 %v225
    %v624 = vunpack.c.l.b16 %v226
    %v625 = vunpack.c.l.b16 %v227
    %v626 = vunpack.c.l.b16 %v228
    %v627 = vunpack.c.l.b16 %v229
    %v628 = vunpack.c.l.b16 %v230
    %v629 = vunpack.c.l.b16 %v231
    %v630 = vunpack.c.l.b16 %v232
    %v631 = vunpack.c.l.b16 %v233
    %v632 = vunpack.c.l.b16 %v234
    %v633 = vunpack.c.l.b16 %v235
    %v634 = vunpack.c.l.b16 %v236
    %v635 = vunpack.c.l.b16 %v237
    %v636 = vunpack.c.l.b16 %v238
    %v637 = vunpack.c.l.b16 %v239
    %v638 = vunpack.c.l.b16 %v240
    %v639 = vunpack.c.l.b16 %v241
    %v640 = vunpack.c.l.b16 %v242
    %v641 = vpack.c.b16 %v466, %v465
    %v642 = vpack.c.b16 %v468, %v467
    %v643 = vpack.c.b16 %v470, %v469
    %v644 = vpack.c.b16 %v472, %v471
    %v645 = vpack.c.b16 %v474, %v473
    %v646 = vpack.c.b16 %v476, %v475
    %v647 = vpack.c.b16 %v478, %v477
    %v648 = vpack.c.b16 %v480, %v479
    %v649 = vpack.c.b16 %v482, %v481
    %v650 = vpack.c.b16 %v484, %v483
    %v651 = vpack.c.b16 %v486, %v485
    %v652 = vpack.c.b16 %v488, %v487
    %v653 = vpack.c.b16 %v490, %v489
    %v654 = vpack.c.b16 %v492, %v491
    %v655 = vpack.c.b16 %v494, %v493
    %v656 = vpack.c.b16 %v496, %v495
    %v657 = vpack.c.b16 %v498, %v497
    %v658 = vpack.c.b16 %v500, %v499
    %v659 = vpack.c.b16 %v502, %v501
    %v660 = vpack.c.b16 %v504, %v503
    %v661 = vpack.c.b16 %v506, %v505
    %v662 = vpack.c.b16 %v508, %v507
    %v663 = vpack.c.b16 %v510, %v509
    %v664 = vpack.c.b16 %v512, %v511
    %v665 = vpack.c.b16 %v514, %v513
    %v666 = vpack.c.b16 %v516, %v515
    %v667 = vpack.c.b16 %v518, %v517
    %v668 = vpack.c.b16 %v520, %v519
    %v669 = vpack.c.b16 %v522, %v521
    %v670 = vpack.c.b16 %v524, %v523
    %v671 = vpack.c.b16 %v526, %v525
    %v672 = vpack.c.b16 %v528, %v527
    %v673 = vpack.c.b16 %v530, %v529
    %v674 = vpack.c.b16 %v532, %v531
    %v675 = vpack.c.b16 %v534, %v533
    %v676 = vpack.c.b16 %v536, %v535
    %v677 = vpack.c.b16 %v538, %v537
    %v678 = vpack.c.b16 %v540, %v539
    %v679 = vpack.c.b16 %v542, %v541
    %v680 = vpack.c.b16 %v544, %v543
    %v681 = vpack.c.b16 %v546, %v545
    %v682 = vpack.c.b16 %v548, %v547
    %v683 = vpack.c.b16 %v550, %v549
    %v684 = vpack.c.b16 %v552, %v551
    %v685 = vpack.c.b16 %v554, %v553
    %v686 = vpack.c.b16 %v556, %v555
    %v687 = vpack.c.b16 %v558, %v557
    %v688 = vpack.c.b16 %v560, %v559
    %v689 = vpack.c.b16 %v562, %v561
    %v690 = vpack.c.b16 %v564, %v563
    %v691 = vpack.c.b16 %v566, %v565
    %v692 = vpack.c.b16 %v568, %v567
    %v693 = vpack.c.b16 %v570, %v569
    %v694 = vpack.c.b16 %v572, %v571
    %v695 = vpack.c.b16 %v574, %v573
    %v696 = vpack.c.b16 %v576, %v575
    %v697 = vpack.c.b16 %v578, %v577
    %v698 = vpack.c.b16 %v580, %v579
    %v699 = vpack.c.b16 %v582, %v581
    %v700 = vpack.c.b16 %v584, %v583
    %v701 = vpack.c.b16 %v586, %v585
    %v702 = vpack.c.b16 %v588, %v587
    %v703 = vpack.c.b16 %v590, %v589
    %v704 = vpack.c.b16 %v592, %v591
    %v705 = vpack.c.b16 %v594, %v593
    %v706 = vpack.c.b16 %v596, %v595
    %v707 = vpack.c.b16 %v598, %v597
    %v708 = vpack.c.b16 %v600, %v599
    %v709 = vpack.c.b16 %v602, %v601
    %v710 = vpack.c.b16 %v604, %v603
    %v711 = vpack.c.b16 %v606, %v605
    %v712 = vpack.c.b16 %v608, %v607
    %v713 = vpack.c.b16 %v610, %v609
    %v714 = vpack.c.b16 %v612, %v611
    %v715 = vpack.c.b16 %v614, %v613
    %v716 = vpack.c.b16 %v616, %v615
    %v717 = vpack.c.b16 %v618, %v617
    %v718 = vpack.c.b16 %v620, %v619
    %v719 = vpack.c.b16 %v622, %v621
    %v720 = vpack.c.b16 %v624, %v623
    %v721 = vpack.c.b16 %v626, %v625
    %v722 = vpack.c.b16 %v628, %v627
    %v723 = vpack.c.b16 %v630, %v629
    %v724 = vpack.c.b16 %v632, %v631
    %v725 = vpack.c.b16 %v634, %v633
    %v726 = vpack.c.b16 %v636, %v635
    %v727 = vpack.c.b16 %v638, %v637
    %v728 = vpack.c.b16 %v640, %v639
    %817 = vmatprep.subr.bf16.mxu0 0
    %818 = vmatpush1.bf16.msra.mxu0 %v648
    %819 = vmatprep.subr.bf16.mxu0 0
    %820 = vmatpush1.bf16.msra.mxu0 %v647
    %821 = vmatprep.subr.bf16.mxu0 0
    %822 = vmatpush1.bf16.msra.mxu0 %v646
    %823 = vmatprep.subr.bf16.mxu0 0
    %824 = vmatpush1.bf16.msra.mxu0 %v645
    %825 = vmatprep.subr.bf16.mxu0 0
    %826 = vmatpush1.bf16.msra.mxu0 %v644
    %827 = vmatprep.subr.bf16.mxu0 0
    %828 = vmatpush1.bf16.msra.mxu0 %v643
    %829 = vmatprep.subr.bf16.mxu0 0
    %830 = vmatpush1.bf16.msra.mxu0 %v642
    %831 = vmatprep.subr.bf16.mxu0 0
    %832 = vmatpush1.bf16.msra.mxu0 %v641
    %833 = vmatprep.subr.bf16.mxu0 0
    %834 = vmatpush2.bf16.msra.mxu0 %v656
    %835 = vmatprep.subr.bf16.mxu0 0
    %836 = vmatpush2.bf16.msra.mxu0 %v655
    %837 = vmatprep.subr.bf16.mxu0 0
    %838 = vmatpush2.bf16.msra.mxu0 %v654
    %839 = vmatprep.subr.bf16.mxu0 0
    %840 = vmatpush2.bf16.msra.mxu0 %v653
    %841 = vmatprep.subr.bf16.mxu0 0
    %842 = vmatpush2.bf16.msra.mxu0 %v652
    %843 = vmatprep.subr.bf16.mxu0 0
    %844 = vmatpush2.bf16.msra.mxu0 %v651
    %845 = vmatprep.subr.bf16.mxu0 0
    %846 = vmatpush2.bf16.msra.mxu0 %v650
    %847 = vmatprep.subr.bf16.mxu0 0
    %848 = vmatpush2.bf16.msra.mxu0 %v649
    %849 = vmatprep.mubr.bf16.mxu0 %v268
    %850 = vmatmul.mubr.bf16.gmra.mxu0 %v267
    %v851 = vpop.f32.mrf.mxu0
    %v852 = vadd.f32 %v248, %v851
    %v853 = vpop.f32.mrf.mxu0
    %v854 = vpop.f32.mrf.mxu0
    %v855 = vpop.f32.mrf.mxu0
    %856 = vdwg.mxu0
    %857 = vmatprep.subr.bf16.mxu0 0
    %858 = vmatpush1.bf16.msra.mxu0 %v664
    %859 = vmatprep.subr.bf16.mxu0 0
    %860 = vmatpush1.bf16.msra.mxu0 %v663
    %861 = vmatprep.subr.bf16.mxu0 0
    %862 = vmatpush1.bf16.msra.mxu0 %v662
    %863 = vmatprep.subr.bf16.mxu0 0
    %864 = vmatpush1.bf16.msra.mxu0 %v661
    %865 = vmatprep.subr.bf16.mxu0 0
    %866 = vmatpush1.bf16.msra.mxu0 %v660
    %867 = vmatprep.subr.bf16.mxu0 0
    %868 = vmatpush1.bf16.msra.mxu0 %v659
    %869 = vmatprep.subr.bf16.mxu0 0
    %870 = vmatpush1.bf16.msra.mxu0 %v658
    %871 = vmatprep.subr.bf16.mxu0 0
    %872 = vmatpush1.bf16.msra.mxu0 %v657
    %873 = vmatprep.subr.bf16.mxu0 0
    %874 = vmatpush2.bf16.msra.mxu0 %v672
    %875 = vmatprep.subr.bf16.mxu0 0
    %876 = vmatpush2.bf16.msra.mxu0 %v671
    %877 = vmatprep.subr.bf16.mxu0 0
    %878 = vmatpush2.bf16.msra.mxu0 %v670
    %879 = vmatprep.subr.bf16.mxu0 0
    %880 = vmatpush2.bf16.msra.mxu0 %v669
    %881 = vmatprep.subr.bf16.mxu0 0
    %882 = vmatpush2.bf16.msra.mxu0 %v668
    %883 = vmatprep.subr.bf16.mxu0 0
    %884 = vmatpush2.bf16.msra.mxu0 %v667
    %885 = vmatprep.subr.bf16.mxu0 0
    %886 = vmatpush2.bf16.msra.mxu0 %v666
    %887 = vmatprep.subr.bf16.mxu0 0
    %888 = vmatpush2.bf16.msra.mxu0 %v665
    %889 = vmatprep.mubr.bf16.mxu0 %v270
    %890 = vmatmul.mubr.bf16.gmra.mxu0 %v269
    %v891 = vpop.f32.mrf.mxu0
    %v892 = vadd.f32 %v852, %v891
    %v893 = vpop.f32.mrf.mxu0
    %v894 = vpop.f32.mrf.mxu0
    %v895 = vpop.f32.mrf.mxu0
    %896 = vdwg.mxu0
    %897 = vmatprep.subr.bf16.mxu0 0
    %898 = vmatpush1.bf16.msra.mxu0 %v680
    %899 = vmatprep.subr.bf16.mxu0 0
    %900 = vmatpush1.bf16.msra.mxu0 %v679
    %901 = vmatprep.subr.bf16.mxu0 0
    %902 = vmatpush1.bf16.msra.mxu0 %v678
    %903 = vmatprep.subr.bf16.mxu0 0
    %904 = vmatpush1.bf16.msra.mxu0 %v677
    %905 = vmatprep.subr.bf16.mxu0 0
    %906 = vmatpush1.bf16.msra.mxu0 %v676
    %907 = vmatprep.subr.bf16.mxu0 0
    %908 = vmatpush1.bf16.msra.mxu0 %v675
    %909 = vmatprep.subr.bf16.mxu0 0
    %910 = vmatpush1.bf16.msra.mxu0 %v674
    %911 = vmatprep.subr.bf16.mxu0 0
    %912 = vmatpush1.bf16.msra.mxu0 %v673
    %913 = vmatprep.subr.bf16.mxu0 0
    %914 = vmatpush2.bf16.msra.mxu0 %v688
    %915 = vmatprep.subr.bf16.mxu0 0
    %916 = vmatpush2.bf16.msra.mxu0 %v687
    %917 = vmatprep.subr.bf16.mxu0 0
    %918 = vmatpush2.bf16.msra.mxu0 %v686
    %919 = vmatprep.subr.bf16.mxu0 0
    %920 = vmatpush2.bf16.msra.mxu0 %v685
    %921 = vmatprep.subr.bf16.mxu0 0
    %922 = vmatpush2.bf16.msra.mxu0 %v684
    %923 = vmatprep.subr.bf16.mxu0 0
    %924 = vmatpush2.bf16.msra.mxu0 %v683
    %925 = vmatprep.subr.bf16.mxu0 0
    %926 = vmatpush2.bf16.msra.mxu0 %v682
    %927 = vmatprep.subr.bf16.mxu0 0
    %928 = vmatpush2.bf16.msra.mxu0 %v681
    %929 = vmatprep.mubr.bf16.mxu0 %v272
    %930 = vmatmul.mubr.bf16.gmra.mxu0 %v271
    %v931 = vpop.f32.mrf.mxu0
    %v932 = vadd.f32 %v892, %v931
    %v933 = vpop.f32.mrf.mxu0
    %v934 = vpop.f32.mrf.mxu0
    %v935 = vpop.f32.mrf.mxu0
    %936 = vdwg.mxu0
    %937 = vmatprep.subr.bf16.mxu0 0
    %938 = vmatpush1.bf16.msra.mxu0 %v696
    %939 = vmatprep.subr.bf16.mxu0 0
    %940 = vmatpush1.bf16.msra.mxu0 %v695
    %941 = vmatprep.subr.bf16.mxu0 0
    %942 = vmatpush1.bf16.msra.mxu0 %v694
    %943 = vmatprep.subr.bf16.mxu0 0
    %944 = vmatpush1.bf16.msra.mxu0 %v693
    %945 = vmatprep.subr.bf16.mxu0 0
    %946 = vmatpush1.bf16.msra.mxu0 %v692
    %947 = vmatprep.subr.bf16.mxu0 0
    %948 = vmatpush1.bf16.msra.mxu0 %v691
    %949 = vmatprep.subr.bf16.mxu0 0
    %950 = vmatpush1.bf16.msra.mxu0 %v690
    %951 = vmatprep.subr.bf16.mxu0 0
    %952 = vmatpush1.bf16.msra.mxu0 %v689
    %953 = vmatprep.subr.bf16.mxu0 0
    %954 = vmatpush2.bf16.msra.mxu0 %v704
    %955 = vmatprep.subr.bf16.mxu0 0
    %956 = vmatpush2.bf16.msra.mxu0 %v703
    %957 = vmatprep.subr.bf16.mxu0 0
    %958 = vmatpush2.bf16.msra.mxu0 %v702
    %959 = vmatprep.subr.bf16.mxu0 0
    %960 = vmatpush2.bf16.msra.mxu0 %v701
    %961 = vmatprep.subr.bf16.mxu0 0
    %962 = vmatpush2.bf16.msra.mxu0 %v700
    %963 = vmatprep.subr.bf16.mxu0 0
    %964 = vmatpush2.bf16.msra.mxu0 %v699
    %965 = vmatprep.subr.bf16.mxu0 0
    %966 = vmatpush2.bf16.msra.mxu0 %v698
    %967 = vmatprep.subr.bf16.mxu0 0
    %968 = vmatpush2.bf16.msra.mxu0 %v697
    %969 = vmatprep.mubr.bf16.mxu0 %v274
    %970 = vmatmul.mubr.bf16.gmra.mxu0 %v273
    %v971 = vpop.f32.mrf.mxu0
    %v972 = vadd.f32 %v932, %v971
    %v973 = vpop.f32.mrf.mxu0
    %v974 = vpop.f32.mrf.mxu0
    %v975 = vpop.f32.mrf.mxu0
    %976 = vdwg.mxu0
    %977 = vmatprep.subr.bf16.mxu0 0
    %978 = vmatpush1.bf16.msra.mxu0 %v712
    %979 = vmatprep.subr.bf16.mxu0 0
    %980 = vmatpush1.bf16.msra.mxu0 %v711
    %981 = vmatprep.subr.bf16.mxu0 0
    %982 = vmatpush1.bf16.msra.mxu0 %v710
    %983 = vmatprep.subr.bf16.mxu0 0
    %984 = vmatpush1.bf16.msra.mxu0 %v709
    %985 = vmatprep.subr.bf16.mxu0 0
    %986 = vmatpush1.bf16.msra.mxu0 %v708
    %987 = vmatprep.subr.bf16.mxu0 0
    %988 = vmatpush1.bf16.msra.mxu0 %v707
    %989 = vmatprep.subr.bf16.mxu0 0
    %990 = vmatpush1.bf16.msra.mxu0 %v706
    %991 = vmatprep.subr.bf16.mxu0 0
    %992 = vmatpush1.bf16.msra.mxu0 %v705
    %993 = vmatprep.subr.bf16.mxu0 0
    %994 = vmatpush2.bf16.msra.mxu0 %v720
    %995 = vmatprep.subr.bf16.mxu0 0
    %996 = vmatpush2.bf16.msra.mxu0 %v719
    %997 = vmatprep.subr.bf16.mxu0 0
    %998 = vmatpush2.bf16.msra.mxu0 %v718
    %999 = vmatprep.subr.bf16.mxu0 0
    %1000 = vmatpush2.bf16.msra.mxu0 %v717
    %1001 = vmatprep.subr.bf16.mxu0 0
    %1002 = vmatpush2.bf16.msra.mxu0 %v716
    %1003 = vmatprep.subr.bf16.mxu0 0
    %1004 = vmatpush2.bf16.msra.mxu0 %v715
    %1005 = vmatprep.subr.bf16.mxu0 0
    %1006 = vmatpush2.bf16.msra.mxu0 %v714
    %1007 = vmatprep.subr.bf16.mxu0 0
    %1008 = vmatpush2.bf16.msra.mxu0 %v713
    %1009 = vmatprep.mubr.bf16.mxu0 %v276
    %1010 = vmatmul.mubr.bf16.gmra.mxu0 %v275
    %v1011 = vpop.f32.mrf.mxu0
    %v1012 = vadd.f32 %v972, %v1011
    %v1013 = vpop.f32.mrf.mxu0
    %v1014 = vpop.f32.mrf.mxu0
    %v1015 = vpop.f32.mrf.mxu0
    %1016 = vdwg.mxu0
    %1017 = vmatprep.subr.bf16.mxu0 0
    %1018 = vmatpush1.bf16.msra.mxu0 %v728
    %1019 = vmatprep.subr.bf16.mxu0 0
    %1020 = vmatpush1.bf16.msra.mxu0 %v727
    %1021 = vmatprep.subr.bf16.mxu0 0
    %1022 = vmatpush1.bf16.msra.mxu0 %v726
    %1023 = vmatprep.subr.bf16.mxu0 0
    %1024 = vmatpush1.bf16.msra.mxu0 %v725
    %1025 = vmatprep.subr.bf16.mxu0 0
    %1026 = vmatpush1.bf16.msra.mxu0 %v724
    %1027 = vmatprep.subr.bf16.mxu0 0
    %1028 = vmatpush1.bf16.msra.mxu0 %v723
    %1029 = vmatprep.subr.bf16.mxu0 0
    %1030 = vmatpush1.bf16.msra.mxu0 %v722
    %1031 = vmatprep.subr.bf16.mxu0 0
    %1032 = vmatpush1.bf16.msra.mxu0 %v721
    %1033 = vmatprep.subr.bf16.mxu0 0
    %1034 = vmatpush2.bf16.msra.mxu0 0
    %1035 = vmatprep.subr.bf16.mxu0 0
    %1036 = vmatpush2.bf16.msra.mxu0 0
    %1037 = vmatprep.subr.bf16.mxu0 0
    %1038 = vmatpush2.bf16.msra.mxu0 0
    %1039 = vmatprep.subr.bf16.mxu0 0
    %1040 = vmatpush2.bf16.msra.mxu0 0
    %1041 = vmatprep.subr.bf16.mxu0 0
    %1042 = vmatpush2.bf16.msra.mxu0 0
    %1043 = vmatprep.subr.bf16.mxu0 0
    %1044 = vmatpush2.bf16.msra.mxu0 0
    %1045 = vmatprep.subr.bf16.mxu0 0
    %1046 = vmatpush2.bf16.msra.mxu0 0
    %1047 = vmatprep.subr.bf16.mxu0 0
    %1048 = vmatpush2.bf16.msra.mxu0 0
    %1049 = vmatprep.mubr.bf16.mxu0 0
    %1050 = vmatmul.mubr.bf16.gmra.mxu0 %v277
    %v1051 = vpop.f32.mrf.mxu0
    %v1052 = vadd.f32 %v1012, %v1051
    %v1053 = vpop.f32.mrf.mxu0
    %v1054 = vpop.f32.mrf.mxu0
    %v1055 = vpop.f32.mrf.mxu0
    %1056 = vdwg.mxu0
    %v1057 = vmax.f32 %v1052, 0.0
    %v1058 = vld [vmem:[#allocation7] sm:$0xff]
    %v1059 = vld [vmem:[#allocation7 + $0x8] sm:$0xff]
    %v1060 = vld [vmem:[#allocation7 + $0x10] sm:$0xff]
    %v1061 = vld [vmem:[#allocation7 + $0x18] sm:$0xff]
    %v1062 = vld [vmem:[#allocation7 + $0x20] sm:$0xff]
    %v1063 = vld [vmem:[#allocation7 + $0x28] sm:$0xff]
    %v1064 = vld [vmem:[#allocation7 + $0x30] sm:$0xff]
    %v1065 = vld [vmem:[#allocation7 + $0x38] sm:$0xff]
    %v1066 = vld [vmem:[#allocation7 + $0x40] sm:$0xff]
    %v1067 = vld [vmem:[#allocation7 + $0x48] sm:$0xff]
    %v1068 = vld [vmem:[#allocation7 + $0x50] sm:$0xff]
    %v1069 = vld [vmem:[#allocation7 + $0x58] sm:$0xff]
    %v1070 = vld [vmem:[#allocation7 + $0x60] sm:$0xff]
    %v1071 = vld [vmem:[#allocation7 + $0x68] sm:$0xff]
    %v1072 = vld [vmem:[#allocation7 + $0x70] sm:$0xff]
    %v1073 = vld [vmem:[#allocation7 + $0x78] sm:$0xff]
    %v1074 = vld [vmem:[%s4] sm:$0x1]
    %v1076 = vlaneseq
    %v1077 = vshrl.u32 %v1076, 7
    %v1078 = vsub.s32 0, %v1077
    %v1079 = vrot.slane %v1074, %v1078
    %1081 = vmatprep.subr.mxu0 0.0
    %1082 = vmatpush1.msra.mxu0 %v1073
    %1083 = vmatprep.subr.mxu0 0.0
    %1084 = vmatpush1.msra.mxu0 %v1072
    %1085 = vmatprep.subr.mxu0 0.0
    %1086 = vmatpush1.msra.mxu0 %v1071
    %1087 = vmatprep.subr.mxu0 0.0
    %1088 = vmatpush1.msra.mxu0 %v1070
    %1089 = vmatprep.subr.mxu0 0.0
    %1090 = vmatpush1.msra.mxu0 %v1069
    %1091 = vmatprep.subr.mxu0 0.0
    %1092 = vmatpush1.msra.mxu0 %v1068
    %1093 = vmatprep.subr.mxu0 0.0
    %1094 = vmatpush1.msra.mxu0 %v1067
    %1095 = vmatprep.subr.mxu0 0.0
    %1096 = vmatpush1.msra.mxu0 %v1066
    %1097 = vmatprep.subr.mxu0 0.0
    %1098 = vmatpush1.msra.mxu0 %v1065
    %1099 = vmatprep.subr.mxu0 0.0
    %1100 = vmatpush1.msra.mxu0 %v1064
    %1101 = vmatprep.subr.mxu0 0.0
    %1102 = vmatpush1.msra.mxu0 %v1063
    %1103 = vmatprep.subr.mxu0 0.0
    %1104 = vmatpush1.msra.mxu0 %v1062
    %1105 = vmatprep.subr.mxu0 0.0
    %1106 = vmatpush1.msra.mxu0 %v1061
    %1107 = vmatprep.subr.mxu0 0.0
    %1108 = vmatpush1.msra.mxu0 %v1060
    %1109 = vmatprep.subr.mxu0 0.0
    %1110 = vmatpush1.msra.mxu0 %v1059
    %1111 = vmatprep.subr.mxu0 0.0
    %1112 = vmatpush1.msra.mxu0 %v1058
    %1113 = vmatprep.subr.mxu0 0.0
    %1114 = vmatpush2.msra.mxu0 0.0
    %1115 = vmatprep.subr.mxu0 0.0
    %1116 = vmatpush2.msra.mxu0 0.0
    %1117 = vmatprep.subr.mxu0 0.0
    %1118 = vmatpush2.msra.mxu0 0.0
    %1119 = vmatprep.subr.mxu0 0.0
    %1120 = vmatpush2.msra.mxu0 0.0
    %1121 = vmatprep.subr.mxu0 0.0
    %1122 = vmatpush2.msra.mxu0 0.0
    %1123 = vmatprep.subr.mxu0 0.0
    %1124 = vmatpush2.msra.mxu0 0.0
    %1125 = vmatprep.subr.mxu0 0.0
    %1126 = vmatpush2.msra.mxu0 0.0
    %1127 = vmatprep.subr.mxu0 0.0
    %1128 = vmatpush2.msra.mxu0 0.0
    %1129 = vmatprep.subr.mxu0 0.0
    %1130 = vmatpush2.msra.mxu0 0.0
    %1131 = vmatprep.subr.mxu0 0.0
    %1132 = vmatpush2.msra.mxu0 0.0
    %1133 = vmatprep.subr.mxu0 0.0
    %1134 = vmatpush2.msra.mxu0 0.0
    %1135 = vmatprep.subr.mxu0 0.0
    %1136 = vmatpush2.msra.mxu0 0.0
    %1137 = vmatprep.subr.mxu0 0.0
    %1138 = vmatpush2.msra.mxu0 0.0
    %1139 = vmatprep.subr.mxu0 0.0
    %1140 = vmatpush2.msra.mxu0 0.0
    %1141 = vmatprep.subr.mxu0 0.0
    %1142 = vmatpush2.msra.mxu0 0.0
    %1143 = vmatprep.subr.mxu0 0.0
    %1144 = vmatpush2.msra.mxu0 0.0
    %1145 = vmatprep.mubr.f32.mxu0 0.0
    %1146 = vmatmul.mubr.f32.gmra.mxu0 %v1057
    %v1147 = vpop.f32.mrf.mxu0
    %v1148 = vadd.f32 %v1079, %v1147
    %v1149 = vpop.f32.mrf.mxu0
    %1150 = vdwg.mxu0
    %1151 = vst [vmem:[#allocation8] sm:$0xff] %v1148
    // Predicated region
    $region34: #{tpu_custom_call.1} parent=1 // pred_check
      _
    $region35: #{tpu_custom_call.1} parent=1 // pred_check_branch
      %1153 = sbr.rel (0) target = $region37
    $region36: #{tpu_custom_call.1} parent=1 // pred_region
      %s1155 = ssub.s32 128, 128
      %1156 = vsyncadd [#allocation4], %s1155
      %s1158 = sshll.u32 [#allocation8], 4
      %s1159 = int_to_ptr.vmem [resolvable:$true] %s1158
      %1161 = dma.vmem_to_hbm [thread:$0]  %s1159, 128, %s5, [#allocation4]
    $region37: #{tpu_custom_call.1} parent=1 // pred_fallthru
      _
    // Predicated region
    $region38: #{tpu_custom_call.1} parent=1 // pred_check
      _
    $region39: #{tpu_custom_call.1} parent=1 // pred_check_branch
      %1163 = sbr.rel (0) target = $region41
    $region40: #{tpu_custom_call.1} parent=1 // pred_region
      %1164 = dma.done [#allocation4], 128
    $region41: #{tpu_custom_call.1} parent=1 // pred_fallthru
      _
    %1165 = vsyncpa [#allocation3], 1
    %1166 = vsyncpa [#allocation6], 1
    %1167 = vsyncpa [#allocation4], 1

</llo_original>
